<compile_context>
chip_gen: v5e
topology: v5e:2x2
jax: 0.10.0
libtpu: 0.0.40
codegen_flags: <defaults>
</compile_context>

<pallas_src>
import functools

import jax
import jax.numpy as jnp
from jax.experimental import pallas as pl
from jax.experimental.pallas import tpu as pltpu


def mlp_kernel(x_ref, w1_ref, b1_ref, w2_ref, b2_ref, o_ref):
    # x_ref:  (in_f, TB)  feature-major tile of the (padded) batch
    # w1_ref: (h, in_f)   torch layout (out, in)
    # b1_ref: (h, 1)
    # w2_ref: (out, h)
    # b2_ref: (out, 1)
    # o_ref:  (out, TB)
    x_t = x_ref[...]
    # fc1:  h^T = W1 @ x^T + b1   (f32 accumulation on the MXU)
    h = jnp.dot(w1_ref[...], x_t, preferred_element_type=jnp.float32) + b1_ref[...]
    # fc2:  y^T = W2 @ h^T + b2
    h = h.astype(x_t.dtype)  # no-op for f32; keeps the bf16 MXU path when requested
    y = jnp.dot(w2_ref[...], h, preferred_element_type=jnp.float32) + b2_ref[...]
    o_ref[...] = y.astype(o_ref.dtype)


@functools.partial(jax.jit, static_argnames=("block_b", "compute_dtype"))
def mlp_forward(x, w1, b1, w2, b2, *, block_b=4096, compute_dtype=jnp.float32):
    """Forward pass of M.

    x:  (B, 10) f32
    w1: (5, 10) f32   (torch fc1.weight layout: (out, in))
    b1: (5,)    f32
    w2: (10, 5) f32   (torch fc2.weight layout)
    b2: (10,)   f32
    returns (B, 10) f32
    """
    B, in_f = x.shape
    h_f = w1.shape[0]
    out_f = w2.shape[0]

    # Lane-dense batch tile: a multiple of 128, capped at block_b, >= 128.
    tb = min(block_b, 128 * pl.cdiv(B, 128))
    tb = max(128, (tb // 128) * 128)
    b_pad = tb * pl.cdiv(B, tb)

    # Feature-major (transposed) activations; pad batch (lane) dim to b_pad.
    x_t = jnp.transpose(x).astype(compute_dtype)           # (in_f, B)
    if b_pad != B:
        x_t = jnp.pad(x_t, ((0, 0), (0, b_pad - B)))        # (in_f, b_pad)

    w1c = w1.astype(compute_dtype)
    w2c = w2.astype(compute_dtype)
    b1c = b1.reshape(h_f, 1).astype(jnp.float32)             # bias adds stay f32
    b2c = b2.reshape(out_f, 1).astype(jnp.float32)

    out_t = pl.pallas_call(
        mlp_kernel,
        out_shape=jax.ShapeDtypeStruct((out_f, b_pad), jnp.float32),
        grid=(b_pad // tb,),
        in_specs=[
            pl.BlockSpec((in_f, tb), lambda i: (0, i)),      # x^T: batch-tiled
            pl.BlockSpec((h_f, in_f), lambda i: (0, 0)),     # weights: VMEM-resident
            pl.BlockSpec((h_f, 1), lambda i: (0, 0)),
            pl.BlockSpec((out_f, h_f), lambda i: (0, 0)),
            pl.BlockSpec((out_f, 1), lambda i: (0, 0)),
        ],
        out_specs=pl.BlockSpec((out_f, tb), lambda i: (0, i)),
        compiler_params=pltpu.CompilerParams(
            dimension_semantics=("parallel",),               # v7x: 2 TCs split batch
        ),
    )(x_t, w1c, b1c, w2c, b2c)

    # Back to (B, out_f); strip batch padding (wrapper-side plumbing).
    return jnp.transpose(out_t)[:B]


def init_params(key):
    """Deterministic init mimicking torch.nn.Linear's U(-1/sqrt(fan_in), +), torch layout."""
    k1, k2, k3, k4 = jax.random.split(key, 4)
    bound1 = 1.0 / jnp.sqrt(10.0)
    w1 = jax.random.uniform(k1, (5, 10), jnp.float32, -bound1, bound1)   # fc1.weight
    b1 = jax.random.uniform(k2, (5,), jnp.float32, -bound1, bound1)      # fc1.bias
    bound2 = 1.0 / jnp.sqrt(5.0)
    w2 = jax.random.uniform(k3, (10, 5), jnp.float32, -bound2, bound2)   # fc2.weight
    b2 = jax.random.uniform(k4, (10,), jnp.float32, -bound2, bound2)     # fc2.bias
    return w1, b1, w2, b2


def reference(x, w1, b1, w2, b2):
    # Same math as the PyTorch module (torch stores weight as (out, in)).
    return (x @ w1.T + b1) @ w2.T + b2


if __name__ == "__main__":
    key = jax.random.PRNGKey(0)
    kx, kp = jax.random.split(key)

    B = 8  # small demo batch (the wrapper pads the lane dim to 128 internally)
    x = jax.random.normal(kx, (B, 10), jnp.float32)
    w1, b1, w2, b2 = init_params(kp)

    out = mlp_forward(x, w1, b1, w2, b2)
    out = jax.block_until_ready(out)
    ref = reference(x, w1, b1, w2, b2)
    assert out.shape == (B, 10)
    assert jnp.allclose(out, ref, atol=1e-5, rtol=1e-5)

    print("KERNEL_OK")
</pallas_src>

<mosaic_0001>
module attributes {stable_mosaic.version = 11 : i64} {
  func.func @mlp_kernel(%arg0: i32, %arg1: memref<10x128xf32, #tpu.memory_space<vmem>>, %arg2: memref<5x10xf32, #tpu.memory_space<vmem>>, %arg3: memref<5x1xf32, #tpu.memory_space<vmem>>, %arg4: memref<10x5xf32, #tpu.memory_space<vmem>>, %arg5: memref<10x1xf32, #tpu.memory_space<vmem>>, %arg6: memref<10x128xf32, #tpu.memory_space<vmem>>) attributes {dimension_semantics = [#tpu.dimension_semantics<parallel>], iteration_bounds = array<i64: 1>, scalar_prefetch = 0 : i64, scratch_operands = 0 : i64, tpu.core_type = #tpu.core_type<tc>, window_params = [{transform_indices = @transform_0, window_bounds = array<i64: 10, 128>}, {pipeline_mode = #tpu.pipeline_mode<synchronous>, transform_indices = @transform_1, window_bounds = array<i64: 5, 10>}, {pipeline_mode = #tpu.pipeline_mode<synchronous>, transform_indices = @transform_2, window_bounds = array<i64: 5, 1>}, {pipeline_mode = #tpu.pipeline_mode<synchronous>, transform_indices = @transform_3, window_bounds = array<i64: 10, 5>}, {pipeline_mode = #tpu.pipeline_mode<synchronous>, transform_indices = @transform_4, window_bounds = array<i64: 10, 1>}, {transform_indices = @transform_5, window_bounds = array<i64: 10, 128>}]} {
    %c0 = arith.constant 0 : index
    %c0_0 = arith.constant 0 : index
    %0 = vector.load %arg1[%c0, %c0_0] : memref<10x128xf32, #tpu.memory_space<vmem>>, vector<10x128xf32>
    %c0_1 = arith.constant 0 : index
    %c0_2 = arith.constant 0 : index
    %1 = vector.load %arg2[%c0_1, %c0_2] : memref<5x10xf32, #tpu.memory_space<vmem>>, vector<5x10xf32>
    %cst = arith.constant dense<0.000000e+00> : vector<5x128xf32>
    %2 = tpu.matmul %1, %0, %cst {dimension_numbers = #tpu.dot_dimension_numbers<[1], [0], [0], [1], [0, 0, 1, 1], [], []>} : vector<5x10xf32>, vector<10x128xf32>, vector<5x128xf32> -> vector<5x128xf32>
    %c0_3 = arith.constant 0 : index
    %c0_4 = arith.constant 0 : index
    %3 = vector.load %arg3[%c0_3, %c0_4] : memref<5x1xf32, #tpu.memory_space<vmem>>, vector<5x1xf32>
    %4 = vector.broadcast %3 : vector<5x1xf32> to vector<5x128xf32>
    %5 = arith.addf %2, %4 : vector<5x128xf32>
    %c0_5 = arith.constant 0 : index
    %c0_6 = arith.constant 0 : index
    %6 = vector.load %arg4[%c0_5, %c0_6] : memref<10x5xf32, #tpu.memory_space<vmem>>, vector<10x5xf32>
    %cst_7 = arith.constant dense<0.000000e+00> : vector<10x128xf32>
    %7 = tpu.matmul %6, %5, %cst_7 {dimension_numbers = #tpu.dot_dimension_numbers<[1], [0], [0], [1], [0, 0, 1, 1], [], []>} : vector<10x5xf32>, vector<5x128xf32>, vector<10x128xf32> -> vector<10x128xf32>
    %c0_8 = arith.constant 0 : index
    %c0_9 = arith.constant 0 : index
    %8 = vector.load %arg5[%c0_8, %c0_9] : memref<10x1xf32, #tpu.memory_space<vmem>>, vector<10x1xf32>
    %9 = vector.broadcast %8 : vector<10x1xf32> to vector<10x128xf32>
    %10 = arith.addf %7, %9 : vector<10x128xf32>
    %c0_10 = arith.constant 0 : index
    %c0_11 = arith.constant 0 : index
    %11 = vector.load %arg6[%c0_10, %c0_11] : memref<10x128xf32, #tpu.memory_space<vmem>>, vector<10x128xf32>
    tpu.vector_store %arg6[%c0_10, %c0_11], %10 {strides = array<i32>} : memref<10x128xf32, #tpu.memory_space<vmem>>, vector<10x128xf32>,
    return
  }
  func.func @transform_0(%arg0: i32) -> (i32, i32) {
    %c0_i32 = arith.constant 0 : i32
    %c0_i32_0 = arith.constant 0 : i32
    return %c0_i32, %arg0 : i32, i32
  }
  func.func @transform_1(%arg0: i32) -> (i32, i32) {
    %c0_i32 = arith.constant 0 : i32
    %c0_i32_0 = arith.constant 0 : i32
    %c0_i32_1 = arith.constant 0 : i32
    return %c0_i32, %c0_i32_0 : i32, i32
  }
  func.func @transform_2(%arg0: i32) -> (i32, i32) {
    %c0_i32 = arith.constant 0 : i32
    %c0_i32_0 = arith.constant 0 : i32
    %c0_i32_1 = arith.constant 0 : i32
    return %c0_i32, %c0_i32_0 : i32, i32
  }
  func.func @transform_3(%arg0: i32) -> (i32, i32) {
    %c0_i32 = arith.constant 0 : i32
    %c0_i32_0 = arith.constant 0 : i32
    %c0_i32_1 = arith.constant 0 : i32
    return %c0_i32, %c0_i32_0 : i32, i32
  }
  func.func @transform_4(%arg0: i32) -> (i32, i32) {
    %c0_i32 = arith.constant 0 : i32
    %c0_i32_0 = arith.constant 0 : i32
    %c0_i32_1 = arith.constant 0 : i32
    return %c0_i32, %c0_i32_0 : i32, i32
  }
  func.func @transform_5(%arg0: i32) -> (i32, i32) {
    %c0_i32 = arith.constant 0 : i32
    %c0_i32_0 = arith.constant 0 : i32
    return %c0_i32, %arg0 : i32, i32
  }
}

</mosaic_0001>

<llo_original>
// kernel: mlp_forward.1
$region0: #{mlp_forward.1}
  #allocation0 [shape = 'u32[]', space=smem, size = 0x4, offset = 0x4, fixed_abs, tag = 'smem constant byte address 0x4 - core index']
  #allocation1 [shape = 'u32[72,128]{1,0:T(1,128)}', space=vmem, size = 0x9000, scoped, tag = 'internal scratch']
  %s0 = inlined_call_operand.vmem [shape: f32[10,128], index: 0, kind: input, shape index: {}]
  %s1 = inlined_call_operand.vmem [shape: f32[5,10], index: 1, kind: input, shape index: {}]
  %s2 = inlined_call_operand.vmem [shape: f32[5,1], index: 2, kind: input, shape index: {}]
  %s3 = inlined_call_operand.vmem [shape: f32[10,5], index: 3, kind: input, shape index: {}]
  %s4 = inlined_call_operand.vmem [shape: f32[10,1], index: 4, kind: input, shape index: {}]
  %s5 = inlined_call_operand.vmem [shape: f32[10,128], index: 5, kind: output, shape index: {}]
  %s6 = sld [smem:[#allocation0]]
  $region30: #{mlp_forward.1} parent=0
    _
  %s8 = ssub.s32 1, %s6
  %s9 = scalar_select 0, %s8, %s6
  // Predicated region
  $region2: #{mlp_forward.1} parent=0 // pred_check
    _
  $region3: #{mlp_forward.1} parent=0 // pred_check_branch
    %11 = sbr.rel (0) target = $region5
  $region4: #{mlp_forward.1} parent=0 // pred_region
    _
  $region5: #{mlp_forward.1} parent=0 // pred_fallthru
    _
  // Predicated region
  $region6: #{mlp_forward.1} parent=0 // pred_check
    _
  $region7: #{mlp_forward.1} parent=0 // pred_check_branch
    %13 = sbr.rel (0) target = $region9
  $region8: #{mlp_forward.1} parent=0 // pred_region
    _
  $region9: #{mlp_forward.1} parent=0 // pred_fallthru
    _
  // Predicated region
  $region10: #{mlp_forward.1} parent=0 // pred_check
    _
  $region11: #{mlp_forward.1} parent=0 // pred_check_branch
    %15 = sbr.rel (0) target = $region13
  $region12: #{mlp_forward.1} parent=0 // pred_region
    _
  $region13: #{mlp_forward.1} parent=0 // pred_fallthru
    _
  // Predicated region
  $region14: #{mlp_forward.1} parent=0 // pred_check
    _
  $region15: #{mlp_forward.1} parent=0 // pred_check_branch
    %17 = sbr.rel (0) target = $region17
  $region16: #{mlp_forward.1} parent=0 // pred_region
    _
  $region17: #{mlp_forward.1} parent=0 // pred_fallthru
    _
  // Predicated region
  $region18: #{mlp_forward.1} parent=0 // pred_check
    _
  $region19: #{mlp_forward.1} parent=0 // pred_check_branch
    %19 = sbr.rel (0) target = $region21
  $region20: #{mlp_forward.1} parent=0 // pred_region
    _
  $region21: #{mlp_forward.1} parent=0 // pred_fallthru
    _
  %v20 = vld [vmem:[%s0] sm:$0xff]
  %v21 = vld [vmem:[%s0 + $0x8] sm:$0x3]
  %v22 = vld [vmem:[%s1] sm:$0x1f]
  %v23 = vld [vmem:[%s2] sm:$0x1f]
  %25 = vset.pattern.permute.xlu0 0
  %26 = vperm.xlu0 %25, %v23
  %v27 = vpop.permute.xlu0 %26
  %vm29 = vcmask 80896
  %v31 = vsel %vm29, %v22, 0
  %vm33 = vcmask 1041408
  %v35 = vsel %vm33, %v21, 0
  %37 = vmatpush.msra.mxu0 0.0
  %38 = vmatpush.msra.mxu0 0.0
  %39 = vmatpush.msra.mxu0 0.0
  %40 = vmatpush.msra.mxu0 0.0
  %41 = vmatpush.msra.mxu0 0.0
  %42 = vmatpush.msra.mxu0 0.0
  %43 = vmatpush.msra.mxu0 0.0
  %44 = vmatpush.msra.mxu0 0.0
  %45 = vmatpush.msra.mxu0 0.0
  %46 = vmatpush.msra.mxu0 0.0
  %47 = vmatpush.msra.mxu0 0.0
  %48 = vmatpush.msra.mxu0 0.0
  %49 = vmatpush.msra.mxu0 0.0
  %50 = vmatpush.msra.mxu0 0.0
  %51 = vmatpush.msra.mxu0 %v35
  %52 = vmatpush.msra.mxu0 %v20
  %53 = vmatmul.f32.gmra.mxu0 %v31
  %v54 = vpop.f32.mrf.mxu0
  %v55 = vadd.f32 %v27, %v54
  %56 = vdwg.mxu0
  %v57 = vld [vmem:[%s3] sm:$0xff]
  %v58 = vld [vmem:[%s3 + $0x8] sm:$0x3]
  %v59 = vld [vmem:[%s4] sm:$0xff]
  %v60 = vld [vmem:[%s4 + $0x8] sm:$0x3]
  %62 = vset.pattern.permute.xlu0 0
  %63 = vperm.xlu0 %62, %v59
  %v64 = vpop.permute.xlu0 %63
  %67 = vset.pattern.permute.xlu0 0
  %68 = vperm.xlu0 %67, %v60
  %v69 = vpop.permute.xlu0 %68
  %vm71 = vcmask 39936
  %v73 = vsel %vm71, %v57, 0
  %v76 = vsel %vm71, %v58, 0
  %vm78 = vcmask 1044480
  %v80 = vsel %vm78, %v55, 0
  %82 = vmatpush.msra.mxu0 0.0
  %83 = vmatpush.msra.mxu0 0.0
  %84 = vmatpush.msra.mxu0 0.0
  %85 = vmatpush.msra.mxu0 0.0
  %86 = vmatpush.msra.mxu0 0.0
  %87 = vmatpush.msra.mxu0 0.0
  %88 = vmatpush.msra.mxu0 0.0
  %89 = vmatpush.msra.mxu0 0.0
  %90 = vmatpush.msra.mxu0 0.0
  %91 = vmatpush.msra.mxu0 0.0
  %92 = vmatpush.msra.mxu0 0.0
  %93 = vmatpush.msra.mxu0 0.0
  %94 = vmatpush.msra.mxu0 0.0
  %95 = vmatpush.msra.mxu0 0.0
  %96 = vmatpush.msra.mxu0 0.0
  %97 = vmatpush.msra.mxu0 %v80
  %98 = vmatmul.f32.gmra.mxu0 %v73
  %v99 = vpop.f32.mrf.mxu0
  %v100 = vadd.f32 %v64, %v99
  %101 = vmatmul.f32.gmra.mxu0 %v76
  %v102 = vpop.f32.mrf.mxu0
  %v103 = vadd.f32 %v69, %v102
  %104 = vdwg.mxu0
  %105 = vst [vmem:[%s5] sm:$0xff] %v100
  %106 = vst [vmem:[%s5 + $0x8] sm:$0x3] %v103
  // Predicated region
  $region22: #{mlp_forward.1} parent=0 // pred_check
    _
  $region23: #{mlp_forward.1} parent=0 // pred_check_branch
    %108 = sbr.rel (0) target = $region25
  $region24: #{mlp_forward.1} parent=0 // pred_region
    _
  $region25: #{mlp_forward.1} parent=0 // pred_fallthru
    _
  // Predicated region
  $region26: #{mlp_forward.1} parent=0 // pred_check
    _
  $region27: #{mlp_forward.1} parent=0 // pred_check_branch
    %110 = sbr.rel (0) target = $region29
  $region28: #{mlp_forward.1} parent=0 // pred_region
    _
  $region29: #{mlp_forward.1} parent=0 // pred_fallthru
    _

</llo_original>
